<compile_context>
chip_gen: v7x
topology: tpu7x:2x2x1
jax: 0.10.0
libtpu: 0.0.40
codegen_flags: <defaults>
</compile_context>

<pallas_src>
import functools
import math

import jax
import jax.numpy as jnp
from jax import lax
from jax.experimental import pallas as pl
from jax.experimental.pallas import tpu as pltpu


# ----------------------------- Pallas kernels -----------------------------

def _layernorm_kernel(x_ref, g_ref, b_ref, o_ref):
    # x block: [1, S, H] -> LayerNorm over H (f32 math), bf16 output.
    x = x_ref[0].astype(jnp.float32)
    mu = jnp.mean(x, axis=-1, keepdims=True)
    var = jnp.mean(jnp.square(x - mu), axis=-1, keepdims=True)
    y = (x - mu) * lax.rsqrt(var + 1e-12) * g_ref[...] + b_ref[...]
    o_ref[0] = y.astype(o_ref.dtype)


def _encoder_layer_kernel(x_ref, bias_ref,
                          wqkv_ref, bqkv_ref, wo_ref, bo_ref, g1_ref, b1_ref,
                          w1_ref, bf1_ref, w2_ref, bf2_ref, g2_ref, b2_ref,
                          *rest, hidden, heads, head_dim, scale, with_head):
    # Fully fused encoder layer (one batch element per grid step):
    #   QKV proj -> per-head masked softmax attention -> out proj -> LN1 ->
    #   FFN (GELU) -> LN2  [-> classifier head on the last layer].
    if with_head:
        cw_ref, cb_ref, o_ref, logit_ref, qkv_ref, ctx_ref = rest
    else:
        o_ref, qkv_ref, ctx_ref = rest

    x = x_ref[0]                                          # [S, H] bf16
    bias = bias_ref[0]                                    # [1, S] additive key mask

    # ---- fused QKV projection, produced TRANSPOSED: qkv_t[c, s] ----
    qkv_t = lax.dot_general(wqkv_ref[...], x, (((0,), (1,)), ((), ())),
                            preferred_element_type=jnp.float32) + bqkv_ref[...]
    # softmax scale folded into q once (single [H, S] multiply).
    qkv_ref[:hidden, :] = qkv_t[:hidden, :] * scale
    qkv_ref[hidden:, :] = qkv_t[hidden:, :]

    # ---- per-head attention: only one head's [S, S] scores live at a time;
    #      each head's context goes into a disjoint sublane slice of ctx_ref.
    @pl.loop(0, heads)
    def _(h):
        q_off = pl.multiple_of(h * head_dim, head_dim)
        k_off = pl.multiple_of(hidden + h * head_dim, head_dim)
        v_off = pl.multiple_of(2 * hidden + h * head_dim, head_dim)
        qh = qkv_ref[pl.ds(q_off, head_dim), :].astype(jnp.bfloat16)   # [D, S]
        kh = qkv_ref[pl.ds(k_off, head_dim), :].astype(jnp.bfloat16)   # [D, S]
        vh = qkv_ref[pl.ds(v_off, head_dim), :].astype(jnp.bfloat16)   # [D, S]
        # scores[sq, sk] = sum_d qh[d, sq] * kh[d, sk]   (K^T folded in)
        scores = lax.dot_general(qh, kh, (((0,), (0,)), ((), ())),
                                 preferred_element_type=jnp.float32) + bias
        scores = scores - jnp.max(scores, axis=-1, keepdims=True)
        p = jnp.exp(scores)
        p = p * pl.reciprocal(jnp.sum(p, axis=-1, keepdims=True), approx=True)
        # ctx_t[d, sq] = sum_sk vh[d, sk] * p[sq, sk]
        ctx_ref[pl.ds(q_off, head_dim), :] = lax.dot_general(
            vh, p.astype(jnp.bfloat16), (((1,), (1,)), ((), ())),
            preferred_element_type=jnp.float32)

    # ---- single full-depth output projection: attn[s, j] = sum_h ctx_t[h, s] wo[h, j]
    attn = lax.dot_general(ctx_ref[...].astype(jnp.bfloat16), wo_ref[...],
                           (((0,), (0,)), ((), ())),
                           preferred_element_type=jnp.float32) + bo_ref[...]

    # residual + LayerNorm 1 (f32 math)
    y = attn + x.astype(jnp.float32)
    mu = jnp.mean(y, axis=-1, keepdims=True)
    var = jnp.mean(jnp.square(y - mu), axis=-1, keepdims=True)
    y1 = (y - mu) * lax.rsqrt(var + 1e-12) * g1_ref[...] + b1_ref[...]
    y1_bf = y1.astype(jnp.bfloat16)

    # ---- FFN: linear -> GELU -> linear
    h1 = jnp.dot(y1_bf, w1_ref[...],
                 preferred_element_type=jnp.float32) + bf1_ref[...]       # [S, F]
    # TODO(synk): HF ERNIE uses exact erf-GELU; tanh approximation kept here.
    h1 = jax.nn.gelu(h1, approximate=True)
    h2 = jnp.dot(h1.astype(jnp.bfloat16), w2_ref[...],
                 preferred_element_type=jnp.float32) + bf2_ref[...]       # [S, H]

    # residual + LayerNorm 2
    y = h2 + y1
    mu = jnp.mean(y, axis=-1, keepdims=True)
    var = jnp.mean(jnp.square(y - mu), axis=-1, keepdims=True)
    y2 = (y - mu) * lax.rsqrt(var + 1e-12) * g2_ref[...] + b2_ref[...]
    o_ref[0] = y2.astype(o_ref.dtype)

    if with_head:
        # fused classifier head, padded to 128 lanes (unmasked lane-dense store)
        logit_ref[0] = (jnp.dot(y2.astype(jnp.bfloat16), cw_ref[...],
                                preferred_element_type=jnp.float32) + cb_ref[...])


# ----------------------------- kernel wrappers -----------------------------

_COMPILER_PARAMS = pltpu.CompilerParams(
    dimension_semantics=("parallel",),
    vmem_limit_bytes=64 * 1024 * 1024,
)


def _bcast(shape):
    """BlockSpec for an operand shared across all grid steps (weights)."""
    return pl.BlockSpec(shape, lambda i: (0,) * len(shape))


def _act_spec(s, h):
    return pl.BlockSpec((1, s, h), lambda i: (i, 0, 0))


def layer_norm(x, g, b):
    bsz, s, h = x.shape
    return pl.pallas_call(
        _layernorm_kernel,
        out_shape=jax.ShapeDtypeStruct((bsz, s, h), jnp.bfloat16),
        grid=(bsz,),
        in_specs=[_act_spec(s, h), _bcast((1, h)), _bcast((1, h))],
        out_specs=_act_spec(s, h),
        compiler_params=_COMPILER_PARAMS,
    )(x, g.reshape(1, h), b.reshape(1, h))


def encoder_layer(x, bias, layer, *, heads, scale, head=None):
    """One fused encoder layer. If `head=(cls_w, cls_b)` also emits logits."""
    bsz, s, h = x.shape
    f = layer["w1"].shape[1]
    with_head = head is not None
    kernel = functools.partial(
        _encoder_layer_kernel, hidden=h, heads=heads, head_dim=h // heads,
        scale=scale, with_head=with_head)

    in_specs = [
        _act_spec(s, h),                               # x
        pl.BlockSpec((1, 1, s), lambda i: (i, 0, 0)),  # additive key mask
        _bcast((h, 3 * h)), _bcast((3 * h, 1)),        # wqkv, bqkv (column)
        _bcast((h, h)), _bcast((1, h)),                # wo, bo
        _bcast((1, h)), _bcast((1, h)),                # ln1 gamma/beta
        _bcast((h, f)), _bcast((1, f)),                # w1, b1
        _bcast((f, h)), _bcast((1, h)),                # w2, b2
        _bcast((1, h)), _bcast((1, h)),                # ln2 gamma/beta
    ]
    args = [x, bias,
            layer["wqkv"], layer["bqkv"].reshape(3 * h, 1),
            layer["wo"], layer["bo"].reshape(1, h),
            layer["ln1_g"].reshape(1, h), layer["ln1_b"].reshape(1, h),
            layer["w1"], layer["b1"].reshape(1, f),
            layer["w2"], layer["b2"].reshape(1, h),
            layer["ln2_g"].reshape(1, h), layer["ln2_b"].reshape(1, h)]

    hidden_shape = jax.ShapeDtypeStruct((bsz, s, h), jnp.bfloat16)
    hidden_spec = _act_spec(s, h)

    if with_head:
        cls_w, cls_b = head
        n = cls_w.shape[1]
        in_specs += [_bcast((h, n)), _bcast((1, n))]
        args += [cls_w, cls_b.reshape(1, n)]
        out_shape = (hidden_shape, jax.ShapeDtypeStruct((bsz, s, n), jnp.float32))
        out_specs = (hidden_spec, pl.BlockSpec((1, s, n), lambda i: (i, 0, 0)))
    else:
        out_shape = hidden_shape
        out_specs = hidden_spec

    return pl.pallas_call(
        kernel,
        out_shape=out_shape,
        grid=(bsz,),
        in_specs=in_specs,
        out_specs=out_specs,
        scratch_shapes=[pltpu.VMEM((3 * h, s), jnp.float32),   # qkv (transposed)
                        pltpu.VMEM((h, s), jnp.float32)],      # ctx (transposed)
        compiler_params=_COMPILER_PARAMS,
    )(*args)


# ----------------------------- model definition -----------------------------

_HEAD_PAD = 128   # lane-dense classifier width; real logits are [:, :, :num_labels]


def _round_up(x, m):
    return (x + m - 1) // m * m


def init_params(key, *, vocab=16, max_len=128, hidden=32, heads=4,
                ffn=64, num_layers=2, num_labels=3):
    def nrm(k, shape):
        return (0.02 * jax.random.normal(k, shape)).astype(jnp.float32)

    keys = jax.random.split(key, 3 + num_layers)

    cls_w = jnp.zeros((hidden, _HEAD_PAD), jnp.float32)
    cls_w = cls_w.at[:, :num_labels].set(nrm(keys[2], (hidden, num_labels)))

    params = {
        "cfg": dict(hidden=hidden, heads=heads, num_labels=num_labels),
        "tok_emb": nrm(keys[0], (vocab, hidden)),
        "pos_emb": nrm(keys[1], (max_len, hidden)),
        "emb_ln_g": jnp.ones((hidden,), jnp.float32),
        "emb_ln_b": jnp.zeros((hidden,), jnp.float32),
        "cls_w": cls_w.astype(jnp.bfloat16),
        "cls_b": jnp.zeros((_HEAD_PAD,), jnp.float32),
        "layers": [],
    }
    for li in range(num_layers):
        lk = jax.random.split(keys[3 + li], 6)
        wq = nrm(lk[0], (hidden, hidden))
        wk = nrm(lk[1], (hidden, hidden))
        wv = nrm(lk[2], (hidden, hidden))
        params["layers"].append({
            "wqkv": jnp.concatenate([wq, wk, wv], axis=1).astype(jnp.bfloat16),
            "bqkv": jnp.zeros((3 * hidden,), jnp.float32),
            "wo": nrm(lk[3], (hidden, hidden)).astype(jnp.bfloat16),
            "bo": jnp.zeros((hidden,), jnp.float32),
            "w1": nrm(lk[4], (hidden, ffn)).astype(jnp.bfloat16),
            "b1": jnp.zeros((ffn,), jnp.float32),
            "w2": nrm(lk[5], (ffn, hidden)).astype(jnp.bfloat16),
            "b2": jnp.zeros((hidden,), jnp.float32),
            "ln1_g": jnp.ones((hidden,), jnp.float32),
            "ln1_b": jnp.zeros((hidden,), jnp.float32),
            "ln2_g": jnp.ones((hidden,), jnp.float32),
            "ln2_b": jnp.zeros((hidden,), jnp.float32),
        })
    return params


def model_forward(params, input_ids):
    """ERNIE-style token-classification model: returns logits [B, S, num_labels]."""
    cfg = params["cfg"]
    hidden, heads, num_labels = cfg["hidden"], cfg["heads"], cfg["num_labels"]
    head_dim = hidden // heads
    b, s0 = input_ids.shape

    # Pad the working sequence to a lane-dense multiple of 128; padding is
    # folded into the additive key mask and the padded rows are cropped below.
    s = _round_up(s0, 128)
    ids = jnp.pad(input_ids, ((0, 0), (0, s - s0)))

    # attention_mask = input_ids > 0 -> additive key bias (HF convention)
    bias = jnp.where(ids > 0, 0.0, -1e9).astype(jnp.float32)[:, None, :]   # [B,1,S]

    # embeddings (glue: gather) then LayerNorm-only Pallas kernel
    x = params["tok_emb"][ids] + params["pos_emb"][:s][None, :, :]          # f32 [B,S,H]
    x = layer_norm(x, params["emb_ln_g"], params["emb_ln_b"])               # bf16 [B,S,H]

    scale = 1.0 / math.sqrt(head_dim)
    n_layers = len(params["layers"])
    logits = None
    for li, layer in enumerate(params["layers"]):
        if li == n_layers - 1:
            # classifier head fused into the last layer's kernel
            x, logits = encoder_layer(x, bias, layer, heads=heads, scale=scale,
                                      head=(params["cls_w"], params["cls_b"]))
        else:
            x = encoder_layer(x, bias, layer, heads=heads, scale=scale)

    return logits[:, :s0, :num_labels]                                      # drop pad rows


def rna_ernie_for_token_cls(params, input_ids):
    """Mirrors RNAErnieForTokenCls.forward."""
    pad = (510 - 500) // 2                                   # = 5
    ids = input_ids[:, 1:-1]                                 # drop first/last token
    logits = model_forward(params, ids)                      # [B, S-2, num_labels]
    logits = logits[:, pad:-pad, :]                          # crop 5 each side
    return jnp.transpose(logits, (0, 2, 1))                  # [B, num_labels, S_crop]


# ----------------------------------- main -----------------------------------

if __name__ == "__main__":
    key = jax.random.PRNGKey(0)
    pkey, dkey = jax.random.split(key)

    VOCAB = 16
    BATCH = 2
    SEQ_IN = 26          # -> 24 after CLS/SEP strip -> 14 after pad-crop

    params = init_params(pkey, vocab=VOCAB, max_len=128, hidden=32, heads=4,
                         ffn=64, num_layers=2, num_labels=3)
    input_ids = jax.random.randint(dkey, (BATCH, SEQ_IN), 0, VOCAB, dtype=jnp.int32)

    out = jax.block_until_ready(rna_ernie_for_token_cls(params, input_ids))

    expected_shape = (BATCH, 3, SEQ_IN - 2 - 2 * 5)
    assert out.shape == expected_shape, (out.shape, expected_shape)
    assert bool(jnp.all(jnp.isfinite(out)))
    print("KERNEL_OK")
</pallas_src>

<mosaic_0001>
module attributes {stable_mosaic.version = 11 : i64} {
  func.func @_layernorm_kernel(%arg0: i32, %arg1: memref<1x128x32xf32, #tpu.memory_space<vmem>>, %arg2: memref<1x32xf32, #tpu.memory_space<vmem>>, %arg3: memref<1x32xf32, #tpu.memory_space<vmem>>, %arg4: memref<1x128x32xbf16, #tpu.memory_space<vmem>>) attributes {dimension_semantics = [#tpu.dimension_semantics<parallel>], iteration_bounds = array<i64: 2>, scalar_prefetch = 0 : i64, scratch_operands = 0 : i64, tpu.core_type = #tpu.core_type<tc>, window_params = [{transform_indices = @transform_0, window_bounds = array<i64: 1, 128, 32>}, {pipeline_mode = #tpu.pipeline_mode<synchronous>, transform_indices = @transform_1, window_bounds = array<i64: 1, 32>}, {pipeline_mode = #tpu.pipeline_mode<synchronous>, transform_indices = @transform_2, window_bounds = array<i64: 1, 32>}, {transform_indices = @transform_3, window_bounds = array<i64: 1, 128, 32>}]} {
    %c0 = arith.constant 0 : index
    %c0_0 = arith.constant 0 : index
    %c0_1 = arith.constant 0 : index
    %0 = vector.load %arg1[%c0, %c0_0, %c0_1] : memref<1x128x32xf32, #tpu.memory_space<vmem>>, vector<1x128x32xf32>
    %1 = vector.shape_cast %0 : vector<1x128x32xf32> to vector<128x32xf32>
    %cst = arith.constant dense<0.000000e+00> : vector<128xf32>
    %2 = vector.multi_reduction <add>, %1, %cst [1] : vector<128x32xf32> to vector<128xf32>
    %3 = vector.shape_cast %2 : vector<128xf32> to vector<128x1xf32>
    %cst_2 = arith.constant 3.200000e+01 : f32
    %4 = vector.broadcast %cst_2 : f32 to vector<128x1xf32>
    %5 = arith.divf %3, %4 : vector<128x1xf32>
    %6 = vector.broadcast %5 : vector<128x1xf32> to vector<128x32xf32>
    %7 = arith.subf %1, %6 : vector<128x32xf32>
    %8 = arith.mulf %7, %7 : vector<128x32xf32>
    %cst_3 = arith.constant dense<0.000000e+00> : vector<128xf32>
    %9 = vector.multi_reduction <add>, %8, %cst_3 [1] : vector<128x32xf32> to vector<128xf32>
    %10 = vector.shape_cast %9 : vector<128xf32> to vector<128x1xf32>
    %cst_4 = arith.constant 3.200000e+01 : f32
    %11 = vector.broadcast %cst_4 : f32 to vector<128x1xf32>
    %12 = arith.divf %10, %11 : vector<128x1xf32>
    %13 = vector.broadcast %5 : vector<128x1xf32> to vector<128x32xf32>
    %14 = arith.subf %1, %13 : vector<128x32xf32>
    %cst_5 = arith.constant 9.99999996E-13 : f32
    %15 = vector.broadcast %cst_5 : f32 to vector<128x1xf32>
    %16 = arith.addf %12, %15 : vector<128x1xf32>
    %17 = math.rsqrt %16 : vector<128x1xf32>
    %18 = vector.broadcast %17 : vector<128x1xf32> to vector<128x32xf32>
    %19 = arith.mulf %14, %18 : vector<128x32xf32>
    %c0_6 = arith.constant 0 : index
    %c0_7 = arith.constant 0 : index
    %20 = vector.load %arg2[%c0_6, %c0_7] : memref<1x32xf32, #tpu.memory_space<vmem>>, vector<1x32xf32>
    %21 = vector.broadcast %20 : vector<1x32xf32> to vector<128x32xf32>
    %22 = arith.mulf %19, %21 : vector<128x32xf32>
    %c0_8 = arith.constant 0 : index
    %c0_9 = arith.constant 0 : index
    %23 = vector.load %arg3[%c0_8, %c0_9] : memref<1x32xf32, #tpu.memory_space<vmem>>, vector<1x32xf32>
    %24 = vector.broadcast %23 : vector<1x32xf32> to vector<128x32xf32>
    %25 = arith.addf %22, %24 : vector<128x32xf32>
    %26 = arith.truncf %25 : vector<128x32xf32> to vector<128x32xbf16>
    %c0_10 = arith.constant 0 : index
    %c0_11 = arith.constant 0 : index
    %c0_12 = arith.constant 0 : index
    %27 = vector.load %arg4[%c0_10, %c0_11, %c0_12] : memref<1x128x32xbf16, #tpu.memory_space<vmem>>, vector<1x128x32xbf16>
    %28 = vector.shape_cast %27 : vector<1x128x32xbf16> to vector<128x32xbf16>
    %29 = vector.shape_cast %26 : vector<128x32xbf16> to vector<1x128x32xbf16>
    tpu.vector_store %arg4[%c0_10, %c0_11, %c0_12], %29 {strides = array<i32>} : memref<1x128x32xbf16, #tpu.memory_space<vmem>>, vector<1x128x32xbf16>,
    return
  }
  func.func @transform_0(%arg0: i32) -> (i32, i32, i32) {
    %c0_i32 = arith.constant 0 : i32
    %c0_i32_0 = arith.constant 0 : i32
    %c0_i32_1 = arith.constant 0 : i32
    return %arg0, %c0_i32, %c0_i32_0 : i32, i32, i32
  }
  func.func @transform_1(%arg0: i32) -> (i32, i32) {
    %c0_i32 = arith.constant 0 : i32
    %c0_i32_0 = arith.constant 0 : i32
    %c0_i32_1 = arith.constant 0 : i32
    return %c0_i32, %c0_i32_0 : i32, i32
  }
  func.func @transform_2(%arg0: i32) -> (i32, i32) {
    %c0_i32 = arith.constant 0 : i32
    %c0_i32_0 = arith.constant 0 : i32
    %c0_i32_1 = arith.constant 0 : i32
    return %c0_i32, %c0_i32_0 : i32, i32
  }
  func.func @transform_3(%arg0: i32) -> (i32, i32, i32) {
    %c0_i32 = arith.constant 0 : i32
    %c0_i32_0 = arith.constant 0 : i32
    %c0_i32_1 = arith.constant 0 : i32
    return %arg0, %c0_i32, %c0_i32_0 : i32, i32, i32
  }
}

</mosaic_0001>

<llo_original>
// kernel: tpu_custom_call.1
$region0: #{tpu_custom_call.1}
  #allocation0 [shape = 'u32[]', space=smem, size = 0x4, offset = 0x4, fixed_abs, tag = 'smem constant byte address 0x4 - core index']
  #allocation1 [shape = 'u32[144,128]{1,0:T(1,128)}', space=vmem, size = 0x12000, scoped, tag = 'internal scratch']
  %s0 = inlined_call_operand.hbm [shape: f32[2,128,32], index: 0, kind: input, shape index: {}]
  %s1 = inlined_call_operand.hbm [shape: f32[1,32], index: 1, kind: input, shape index: {}]
  %s2 = inlined_call_operand.hbm [shape: f32[1,32], index: 2, kind: input, shape index: {}]
  %s3 = inlined_call_operand.hbm [shape: bf16[2,128,32], index: 3, kind: output, shape index: {}]
  %s4 = sld [smem:[#allocation0]]
  $region57: #{tpu_custom_call.1} parent=0
    _
  %s6 = ssub.s32 1, %s4
  %s7 = scalar_select 0, %s6, %s4
  $region1: #{tpu_custom_call.1} parent=0
    #allocation2 [shape = 'u8[131072]{0}', space=vmem, size = 0x20000, scoped, tag = 'input window, operand 0']
    #allocation3 [shape = 's32[2]{0}', space=sflag, size = 0x8, scoped, tag = 'scoped memory for tpu_custom_call.1']
    #allocation4 [shape = 's32[2]{0}', space=sflag, size = 0x8, scoped, tag = 'scoped memory for tpu_custom_call.1']
    #allocation5 [shape = 'u8[512]{0}', space=vmem, size = 0x400, scoped, tag = 'input window, operand 1, single buffered']
    #allocation6 [shape = 's32[1]{0}', space=sflag, size = 0x4, scoped, tag = 'scoped memory for tpu_custom_call.1']
    #allocation7 [shape = 'u8[512]{0}', space=vmem, size = 0x400, scoped, tag = 'input window, operand 2, single buffered']
    #allocation8 [shape = 'u8[65536]{0}', space=vmem, size = 0x10000, scoped, tag = 'output window, operand 0']
    %8 = vsyncpa [#allocation3], 0
    %s9 = scalar_lea.sflag [#allocation3], 1
    %10 = vsyncpa %s9, 0
    %11 = vsyncpa [#allocation6], 0
    %12 = vsyncpa [#allocation4], 0
    %s13 = scalar_lea.sflag [#allocation4], 1
    %14 = vsyncpa %s13, 0
    loop: start=0, step=1, limit=4
    $region2: #{tpu_custom_call.1} parent=1 // loop_pre_header
      _
    $region3: #{tpu_custom_call.1} parent=1 // loop_header
      %s16 = sphi 0, %s20
      %p17 = scmp.ge.s32.totalorder %s16, 4
      %s26 = sphi 0, %s28
      %s29 = sphi 0, %s26
      %s30 = sphi 0, %s29
      %s46 = sphi 0, %s30
      %s50 = sphi 0, %s50
      %s52 = sphi 0, %s50
      %s53 = sphi 0, %s52
      %s67 = sphi 0, %s53
      %s71 = sphi 0, %s71
      %s73 = sphi 0, %s71
      %s74 = sphi 0, %s73
      %s88 = sphi 0, %s74
      %s94 = sphi 0, %s96
      %s97 = sphi 0, %s94
      %s98 = sphi 0, %s97
      %s114 = sphi 0, %s98
    $region4: #{tpu_custom_call.1} parent=1 // loop_header_branch
      %19 = sbr.rel (%p17) target = $region8
    $region5: #{tpu_custom_call.1} parent=1 // loop_body
      %s21 = ssub.s32 %s16, 1
      %s22 = ssub.s32 %s16, 2
      %s23 = sadd.s32 %s16, 1
      %s24 = ssub.s32 %s16, %s23
      %p25 = scmp.eq.s32.totalorder %s24, 0
      %s27 = sadd.s32 %s26, 1
      %s28 = scalar_select %p25, %s26, %s27
      %p31 = pneg %p25
      %p32 = scmp.eq.s32.totalorder %s16, 1
      %p33 = por %p31, %p32
      %p34 = scmp.ne.s32.totalorder %s26, %s29
      %p35 = scmp.eq.s32.totalorder %s16, 0
      %p36 = por %p34, %p35
      %p37 = scmp.ne.s32.totalorder %s26, %s29
      %p38 = scmp.eq.s32.totalorder %s21, 1
      %p39 = por %p37, %p38
      %p40 = scmp.ne.s32.totalorder %s29, %s30
      %p41 = scmp.eq.s32.totalorder %s21, 0
      %p42 = por %p40, %p41
      %p43 = scmp.ne.s32.totalorder %s29, %s30
      %p44 = scmp.eq.s32.totalorder %s22, 1
      %p45 = por %p43, %p44
      %p47 = scmp.ne.s32.totalorder %s30, %s46
      %p48 = scmp.eq.s32.totalorder %s22, 0
      %p49 = por %p47, %p48
      %s51 = sadd.s32 %s50, 1
      %p54 = scmp.eq.s32.totalorder %s16, 1
      %p55 = scmp.ne.s32.totalorder %s50, %s52
      %p56 = scmp.eq.s32.totalorder %s16, 0
      %p57 = por %p55, %p56
      %p58 = scmp.ne.s32.totalorder %s50, %s52
      %p59 = scmp.eq.s32.totalorder %s21, 1
      %p60 = por %p58, %p59
      %p61 = scmp.ne.s32.totalorder %s52, %s53
      %p62 = scmp.eq.s32.totalorder %s21, 0
      %p63 = por %p61, %p62
      %p64 = scmp.ne.s32.totalorder %s52, %s53
      %p65 = scmp.eq.s32.totalorder %s22, 1
      %p66 = por %p64, %p65
      %p68 = scmp.ne.s32.totalorder %s53, %s67
      %p69 = scmp.eq.s32.totalorder %s22, 0
      %p70 = por %p68, %p69
      %s72 = sadd.s32 %s71, 1
      %p75 = scmp.eq.s32.totalorder %s16, 1
      %p76 = scmp.ne.s32.totalorder %s71, %s73
      %p77 = scmp.eq.s32.totalorder %s16, 0
      %p78 = por %p76, %p77
      %p79 = scmp.ne.s32.totalorder %s71, %s73
      %p80 = scmp.eq.s32.totalorder %s21, 1
      %p81 = por %p79, %p80
      %p82 = scmp.ne.s32.totalorder %s73, %s74
      %p83 = scmp.eq.s32.totalorder %s21, 0
      %p84 = por %p82, %p83
      %p85 = scmp.ne.s32.totalorder %s73, %s74
      %p86 = scmp.eq.s32.totalorder %s22, 1
      %p87 = por %p85, %p86
      %p89 = scmp.ne.s32.totalorder %s74, %s88
      %p90 = scmp.eq.s32.totalorder %s22, 0
      %p91 = por %p89, %p90
      %s92 = ssub.s32 %s16, %s23
      %p93 = scmp.eq.s32.totalorder %s92, 0
      %s95 = sadd.s32 %s94, 1
      %s96 = scalar_select %p93, %s94, %s95
      %p99 = pneg %p93
      %p100 = scmp.eq.s32.totalorder %s16, 1
      %p101 = por %p99, %p100
      %p102 = scmp.ne.s32.totalorder %s94, %s97
      %p103 = scmp.eq.s32.totalorder %s16, 0
      %p104 = por %p102, %p103
      %p105 = scmp.ne.s32.totalorder %s94, %s97
      %p106 = scmp.eq.s32.totalorder %s21, 1
      %p107 = por %p105, %p106
      %p108 = scmp.ne.s32.totalorder %s97, %s98
      %p109 = scmp.eq.s32.totalorder %s21, 0
      %p110 = por %p108, %p109
      %p111 = scmp.ne.s32.totalorder %s97, %s98
      %p112 = scmp.eq.s32.totalorder %s22, 1
      %p113 = por %p111, %p112
      %p115 = scmp.ne.s32.totalorder %s98, %s114
      %p116 = scmp.eq.s32.totalorder %s22, 0
      %p117 = por %p115, %p116
      %p118 = scmp.le.s32.totalorder 1, %s16
      %p119 = scmp.lt.s32.totalorder %s16, 3
      %p120 = pnand %p118, %p119
      %p121 = pneg %p120
      // Predicated region
      $region9: #{tpu_custom_call.1} parent=5 // pred_check
        _
      $region10: #{tpu_custom_call.1} parent=5 // pred_check_branch
        %123 = sbr.rel (%p120) target = $region12
      $region11: #{tpu_custom_call.1} parent=5 // pred_region
        %s124 = ssub.s32 %s16, 1
        // Predicated region
        $region13: #{tpu_custom_call.1} parent=11 // pred_check
          %p125 = pneg %p63
        $region14: #{tpu_custom_call.1} parent=11 // pred_check_branch
          %127 = sbr.rel (%p125) target = $region16
        $region15: #{tpu_custom_call.1} parent=11 // pred_region
          %s129 = ssub.s32 16, 16
          %130 = vsyncadd [#allocation6], %s129
          %s132 = sshll.u32 [#allocation5], 4
          %s133 = int_to_ptr.vmem [resolvable:$true] %s132
          %135 = dma.hbm_to_vmem [thread:$0]  %s1, 16, %s133, [#allocation6]
        $region16: #{tpu_custom_call.1} parent=11 // pred_fallthru
          _
        // Predicated region
        $region17: #{tpu_custom_call.1} parent=11 // pred_check
          %p136 = pneg %p84
        $region18: #{tpu_custom_call.1} parent=11 // pred_check_branch
          %138 = sbr.rel (%p136) target = $region20
        $region19: #{tpu_custom_call.1} parent=11 // pred_region
          %s140 = ssub.s32 16, 16
          %141 = vsyncadd [#allocation6], %s140
          %s143 = sshll.u32 [#allocation7], 4
          %s144 = int_to_ptr.vmem [resolvable:$true] %s143
          %146 = dma.hbm_to_vmem [thread:$0]  %s2, 16, %s144, [#allocation6]
        $region20: #{tpu_custom_call.1} parent=11 // pred_fallthru
          _
      $region12: #{tpu_custom_call.1} parent=5 // pred_fallthru
        _
      %p147 = scmp.lt.s32.totalorder %s16, 2
      // Predicated region
      $region21: #{tpu_custom_call.1} parent=5 // pred_check
        %p148 = pneg %p147
      $region22: #{tpu_custom_call.1} parent=5 // pred_check_branch
        %150 = sbr.rel (%p148) target = $region24
      $region23: #{tpu_custom_call.1} parent=5 // pred_region
        // Predicated region
        $region25: #{tpu_custom_call.1} parent=23 // pred_check
          %p151 = pneg %p36
        $region26: #{tpu_custom_call.1} parent=23 // pred_check_branch
          %153 = sbr.rel (%p151) target = $region28
        $region27: #{tpu_custom_call.1} parent=23 // pred_region
          %s154 = sand.u32 %s26, 1
          %s155 = scalar_lea.sflag [#allocation3], %s154
          %s156 = sand.u32 %s26, 1
          %s157 = smul.addr %s156, 128
          %s158 = scalar_lea.vmem [#allocation2], %s157
          %s160 = ssub.s32 2048, 2048
          %161 = vsyncadd %s155, %s160
          %s162 = smul.addr %s16, 16
          %s163 = smul.addr %s162, 128
          %s164 = scalar_lea.hbm %s0, %s163
          %s165 = sshll.u32 %s158, 4
          %s166 = int_to_ptr.vmem [resolvable:$true] %s165
          %171 = dma.hbm_to_vmem [thread:$0]  %s164, 2048, %s166, %s155, 128, 128, 8
        $region28: #{tpu_custom_call.1} parent=23 // pred_fallthru
          _
      $region24: #{tpu_custom_call.1} parent=5 // pred_fallthru
        _
      %p172 = scmp.le.s32.totalorder 1, %s16
      %p173 = scmp.lt.s32.totalorder %s16, 3
      %p174 = pnand %p172, %p173
      %p175 = pneg %p174
      // Predicated region
      $region29: #{tpu_custom_call.1} parent=5 // pred_check
        _
      $region30: #{tpu_custom_call.1} parent=5 // pred_check_branch
        %177 = sbr.rel (%p174) target = $region32
      $region31: #{tpu_custom_call.1} parent=5 // pred_region
        %s178 = ssub.s32 %s16, 1
        %s179 = sand.u32 %s29, 1
        %s180 = scalar_lea.sflag [#allocation3], %s179
        %s181 = sand.u32 %s29, 1
        %s182 = smul.addr %s181, 128
        %s183 = scalar_lea.vmem [#allocation2], %s182
        // Predicated region
        $region33: #{tpu_custom_call.1} parent=31 // pred_check
          %p184 = pneg %p42
        $region34: #{tpu_custom_call.1} parent=31 // pred_check_branch
          %186 = sbr.rel (%p184) target = $region36
        $region35: #{tpu_custom_call.1} parent=31 // pred_region
          %187 = dma.done %s180, 2048
        $region36: #{tpu_custom_call.1} parent=31 // pred_fallthru
          _
        // Predicated region
        $region37: #{tpu_custom_call.1} parent=31 // pred_check
          %p188 = pneg %p63
        $region38: #{tpu_custom_call.1} parent=31 // pred_check_branch
          %190 = sbr.rel (%p188) target = $region40
        $region39: #{tpu_custom_call.1} parent=31 // pred_region
          %191 = dma.done [#allocation6], 16
        $region40: #{tpu_custom_call.1} parent=31 // pred_fallthru
          _
        // Predicated region
        $region41: #{tpu_custom_call.1} parent=31 // pred_check
          %p192 = pneg %p84
        $region42: #{tpu_custom_call.1} parent=31 // pred_check_branch
          %194 = sbr.rel (%p192) target = $region44
        $region43: #{tpu_custom_call.1} parent=31 // pred_region
          %195 = dma.done [#allocation6], 16
        $region44: #{tpu_custom_call.1} parent=31 // pred_fallthru
          _
        %s196 = sand.u32 %s29, 1
        %s197 = scalar_lea.sflag [#allocation3], %s196
        %s198 = sand.u32 %s29, 1
        %s199 = smul.addr %s198, 128
        %s200 = scalar_lea.vmem [#allocation2], %s199
        %p201 = pneg %p42
        %p202 = pneg %p39
        %p203 = pneg %p63
        %p204 = pneg %p60
        %p205 = pneg %p84
        %p206 = pneg %p81
        %p207 = pneg %p110
        %p208 = pneg %p107
        %s209 = sand.u32 %s97, 1
        %s210 = scalar_lea.sflag [#allocation4], %s209
        %s211 = sand.u32 %s97, 1
        %s212 = smul.addr %s211, 64
        %s213 = scalar_lea.vmem [#allocation8], %s212
        %v214 = vld [vmem:[%s183] sm:$0xff]
        %v215 = vld [vmem:[%s183 + $0x8] sm:$0xff]
        %v216 = vld [vmem:[%s183 + $0x10] sm:$0xff]
        %v217 = vld [vmem:[%s183 + $0x18] sm:$0xff]
        %v218 = vld [vmem:[%s183 + $0x20] sm:$0xff]
        %v219 = vld [vmem:[%s183 + $0x28] sm:$0xff]
        %v220 = vld [vmem:[%s183 + $0x30] sm:$0xff]
        %v221 = vld [vmem:[%s183 + $0x38] sm:$0xff]
        %v222 = vld [vmem:[%s183 + $0x40] sm:$0xff]
        %v223 = vld [vmem:[%s183 + $0x48] sm:$0xff]
        %v224 = vld [vmem:[%s183 + $0x50] sm:$0xff]
        %v225 = vld [vmem:[%s183 + $0x58] sm:$0xff]
        %v226 = vld [vmem:[%s183 + $0x60] sm:$0xff]
        %v227 = vld [vmem:[%s183 + $0x68] sm:$0xff]
        %v228 = vld [vmem:[%s183 + $0x70] sm:$0xff]
        %v229 = vld [vmem:[%s183 + $0x78] sm:$0xff]
        %vm230 = vcmask 261120
        %v231 = vsel %vm230, %v214, 0.0
        %232 = vadd.xlane.f32.xlu0 %v231
        %v233 = vpop.xlane.xlu0 %232
        %v234 = vsel %vm230, %v215, 0.0
        %235 = vadd.xlane.f32.xlu0 %v234
        %v236 = vpop.xlane.xlu0 %235
        %v237 = vsel %vm230, %v216, 0.0
        %238 = vadd.xlane.f32.xlu0 %v237
        %v239 = vpop.xlane.xlu0 %238
        %v240 = vsel %vm230, %v217, 0.0
        %241 = vadd.xlane.f32.xlu0 %v240
        %v242 = vpop.xlane.xlu0 %241
        %v243 = vsel %vm230, %v218, 0.0
        %244 = vadd.xlane.f32.xlu0 %v243
        %v245 = vpop.xlane.xlu0 %244
        %v246 = vsel %vm230, %v219, 0.0
        %247 = vadd.xlane.f32.xlu0 %v246
        %v248 = vpop.xlane.xlu0 %247
        %v249 = vsel %vm230, %v220, 0.0
        %250 = vadd.xlane.f32.xlu0 %v249
        %v251 = vpop.xlane.xlu0 %250
        %v252 = vsel %vm230, %v221, 0.0
        %253 = vadd.xlane.f32.xlu0 %v252
        %v254 = vpop.xlane.xlu0 %253
        %v255 = vsel %vm230, %v222, 0.0
        %256 = vadd.xlane.f32.xlu0 %v255
        %v257 = vpop.xlane.xlu0 %256
        %v258 = vsel %vm230, %v223, 0.0
        %259 = vadd.xlane.f32.xlu0 %v258
        %v260 = vpop.xlane.xlu0 %259
        %v261 = vsel %vm230, %v224, 0.0
        %262 = vadd.xlane.f32.xlu0 %v261
        %v263 = vpop.xlane.xlu0 %262
        %v264 = vsel %vm230, %v225, 0.0
        %265 = vadd.xlane.f32.xlu0 %v264
        %v266 = vpop.xlane.xlu0 %265
        %v267 = vsel %vm230, %v226, 0.0
        %268 = vadd.xlane.f32.xlu0 %v267
        %v269 = vpop.xlane.xlu0 %268
        %v270 = vsel %vm230, %v227, 0.0
        %271 = vadd.xlane.f32.xlu0 %v270
        %v272 = vpop.xlane.xlu0 %271
        %v273 = vsel %vm230, %v228, 0.0
        %274 = vadd.xlane.f32.xlu0 %v273
        %v275 = vpop.xlane.xlu0 %274
        %v276 = vsel %vm230, %v229, 0.0
        %277 = vadd.xlane.f32.xlu0 %v276
        %v278 = vpop.xlane.xlu0 %277
        %v279 = vrcp.pop 32.0
        %v280 = vmul.f32 %v233, %v279
        %v281 = vmul.f32 %v236, %v279
        %v282 = vmul.f32 %v239, %v279
        %v283 = vmul.f32 %v242, %v279
        %v284 = vmul.f32 %v245, %v279
        %v285 = vmul.f32 %v248, %v279
        %v286 = vmul.f32 %v251, %v279
        %v287 = vmul.f32 %v254, %v279
        %v288 = vmul.f32 %v257, %v279
        %v289 = vmul.f32 %v260, %v279
        %v290 = vmul.f32 %v263, %v279
        %v291 = vmul.f32 %v266, %v279
        %v292 = vmul.f32 %v269, %v279
        %v293 = vmul.f32 %v272, %v279
        %v294 = vmul.f32 %v275, %v279
        %v295 = vmul.f32 %v278, %v279
        %v296 = vsub.f32 %v214, %v280
        %v297 = vsub.f32 %v215, %v281
        %v298 = vsub.f32 %v216, %v282
        %v299 = vsub.f32 %v217, %v283
        %v300 = vsub.f32 %v218, %v284
        %v301 = vsub.f32 %v219, %v285
        %v302 = vsub.f32 %v220, %v286
        %v303 = vsub.f32 %v221, %v287
        %v304 = vsub.f32 %v222, %v288
        %v305 = vsub.f32 %v223, %v289
        %v306 = vsub.f32 %v224, %v290
        %v307 = vsub.f32 %v225, %v291
        %v308 = vsub.f32 %v226, %v292
        %v309 = vsub.f32 %v227, %v293
        %v310 = vsub.f32 %v228, %v294
        %v311 = vsub.f32 %v229, %v295
        %v312 = vmul.f32 %v296, %v296
        %v313 = vmul.f32 %v297, %v297
        %v314 = vmul.f32 %v298, %v298
        %v315 = vmul.f32 %v299, %v299
        %v316 = vmul.f32 %v300, %v300
        %v317 = vmul.f32 %v301, %v301
        %v318 = vmul.f32 %v302, %v302
        %v319 = vmul.f32 %v303, %v303
        %v320 = vmul.f32 %v304, %v304
        %v321 = vmul.f32 %v305, %v305
        %v322 = vmul.f32 %v306, %v306
        %v323 = vmul.f32 %v307, %v307
        %v324 = vmul.f32 %v308, %v308
        %v325 = vmul.f32 %v309, %v309
        %v326 = vmul.f32 %v310, %v310
        %v327 = vmul.f32 %v311, %v311
        %v328 = vsel %vm230, %v312, 0.0
        %329 = vadd.xlane.f32.xlu0 %v328
        %v330 = vpop.xlane.xlu0 %329
        %v331 = vsel %vm230, %v313, 0.0
        %332 = vadd.xlane.f32.xlu0 %v331
        %v333 = vpop.xlane.xlu0 %332
        %v334 = vsel %vm230, %v314, 0.0
        %335 = vadd.xlane.f32.xlu0 %v334
        %v336 = vpop.xlane.xlu0 %335
        %v337 = vsel %vm230, %v315, 0.0
        %338 = vadd.xlane.f32.xlu0 %v337
        %v339 = vpop.xlane.xlu0 %338
        %v340 = vsel %vm230, %v316, 0.0
        %341 = vadd.xlane.f32.xlu0 %v340
        %v342 = vpop.xlane.xlu0 %341
        %v343 = vsel %vm230, %v317, 0.0
        %344 = vadd.xlane.f32.xlu0 %v343
        %v345 = vpop.xlane.xlu0 %344
        %v346 = vsel %vm230, %v318, 0.0
        %347 = vadd.xlane.f32.xlu0 %v346
        %v348 = vpop.xlane.xlu0 %347
        %v349 = vsel %vm230, %v319, 0.0
        %350 = vadd.xlane.f32.xlu0 %v349
        %v351 = vpop.xlane.xlu0 %350
        %v352 = vsel %vm230, %v320, 0.0
        %353 = vadd.xlane.f32.xlu0 %v352
        %v354 = vpop.xlane.xlu0 %353
        %v355 = vsel %vm230, %v321, 0.0
        %356 = vadd.xlane.f32.xlu0 %v355
        %v357 = vpop.xlane.xlu0 %356
        %v358 = vsel %vm230, %v322, 0.0
        %359 = vadd.xlane.f32.xlu0 %v358
        %v360 = vpop.xlane.xlu0 %359
        %v361 = vsel %vm230, %v323, 0.0
        %362 = vadd.xlane.f32.xlu0 %v361
        %v363 = vpop.xlane.xlu0 %362
        %v364 = vsel %vm230, %v324, 0.0
        %365 = vadd.xlane.f32.xlu0 %v364
        %v366 = vpop.xlane.xlu0 %365
        %v367 = vsel %vm230, %v325, 0.0
        %368 = vadd.xlane.f32.xlu0 %v367
        %v369 = vpop.xlane.xlu0 %368
        %v370 = vsel %vm230, %v326, 0.0
        %371 = vadd.xlane.f32.xlu0 %v370
        %v372 = vpop.xlane.xlu0 %371
        %v373 = vsel %vm230, %v327, 0.0
        %374 = vadd.xlane.f32.xlu0 %v373
        %v375 = vpop.xlane.xlu0 %374
        %v376 = vmul.f32 %v330, %v279
        %v377 = vmul.f32 %v333, %v279
        %v378 = vmul.f32 %v336, %v279
        %v379 = vmul.f32 %v339, %v279
        %v380 = vmul.f32 %v342, %v279
        %v381 = vmul.f32 %v345, %v279
        %v382 = vmul.f32 %v348, %v279
        %v383 = vmul.f32 %v351, %v279
        %v384 = vmul.f32 %v354, %v279
        %v385 = vmul.f32 %v357, %v279
        %v386 = vmul.f32 %v360, %v279
        %v387 = vmul.f32 %v363, %v279
        %v388 = vmul.f32 %v366, %v279
        %v389 = vmul.f32 %v369, %v279
        %v390 = vmul.f32 %v372, %v279
        %v391 = vmul.f32 %v375, %v279
        %v392 = vadd.f32 %v376, 1e-12
        %v393 = vadd.f32 %v377, 1e-12
        %v394 = vadd.f32 %v378, 1e-12
        %v395 = vadd.f32 %v379, 1e-12
        %v396 = vadd.f32 %v380, 1e-12
        %v397 = vadd.f32 %v381, 1e-12
        %v398 = vadd.f32 %v382, 1e-12
        %v399 = vadd.f32 %v383, 1e-12
        %v400 = vadd.f32 %v384, 1e-12
        %v401 = vadd.f32 %v385, 1e-12
        %v402 = vadd.f32 %v386, 1e-12
        %v403 = vadd.f32 %v387, 1e-12
        %v404 = vadd.f32 %v388, 1e-12
        %v405 = vadd.f32 %v389, 1e-12
        %v406 = vadd.f32 %v390, 1e-12
        %v407 = vadd.f32 %v391, 1e-12
        %v408 = vrsqrt.pop %v392
        %v409 = vrsqrt.pop %v393
        %v410 = vrsqrt.pop %v394
        %v411 = vrsqrt.pop %v395
        %v412 = vrsqrt.pop %v396
        %v413 = vrsqrt.pop %v397
        %v414 = vrsqrt.pop %v398
        %v415 = vrsqrt.pop %v399
        %v416 = vrsqrt.pop %v400
        %v417 = vrsqrt.pop %v401
        %v418 = vrsqrt.pop %v402
        %v419 = vrsqrt.pop %v403
        %v420 = vrsqrt.pop %v404
        %v421 = vrsqrt.pop %v405
        %v422 = vrsqrt.pop %v406
        %v423 = vrsqrt.pop %v407
        %v424 = vmul.f32 %v296, %v408
        %v425 = vmul.f32 %v297, %v409
        %v426 = vmul.f32 %v298, %v410
        %v427 = vmul.f32 %v299, %v411
        %v428 = vmul.f32 %v300, %v412
        %v429 = vmul.f32 %v301, %v413
        %v430 = vmul.f32 %v302, %v414
        %v431 = vmul.f32 %v303, %v415
        %v432 = vmul.f32 %v304, %v416
        %v433 = vmul.f32 %v305, %v417
        %v434 = vmul.f32 %v306, %v418
        %v435 = vmul.f32 %v307, %v419
        %v436 = vmul.f32 %v308, %v420
        %v437 = vmul.f32 %v309, %v421
        %v438 = vmul.f32 %v310, %v422
        %v439 = vmul.f32 %v311, %v423
        %v440 = vld [vmem:[#allocation5] sm:$0x1]
        %v442 = vlaneseq
        %v443 = vshrl.u32 %v442, 7
        %v444 = vsub.s32 0, %v443
        %v445 = vrot.slane %v440, %v444
        %v447 = vmul.f32 %v424, %v445
        %v448 = vmul.f32 %v425, %v445
        %v449 = vmul.f32 %v426, %v445
        %v450 = vmul.f32 %v427, %v445
        %v451 = vmul.f32 %v428, %v445
        %v452 = vmul.f32 %v429, %v445
        %v453 = vmul.f32 %v430, %v445
        %v454 = vmul.f32 %v431, %v445
        %v455 = vmul.f32 %v432, %v445
        %v456 = vmul.f32 %v433, %v445
        %v457 = vmul.f32 %v434, %v445
        %v458 = vmul.f32 %v435, %v445
        %v459 = vmul.f32 %v436, %v445
        %v460 = vmul.f32 %v437, %v445
        %v461 = vmul.f32 %v438, %v445
        %v462 = vmul.f32 %v439, %v445
        %v463 = vld [vmem:[#allocation7] sm:$0x1]
        %v465 = vlaneseq
        %v466 = vshrl.u32 %v465, 7
        %v467 = vsub.s32 0, %v466
        %v468 = vrot.slane %v463, %v467
        %v470 = vadd.f32 %v447, %v468
        %v471 = vadd.f32 %v448, %v468
        %v472 = vadd.f32 %v449, %v468
        %v473 = vadd.f32 %v450, %v468
        %v474 = vadd.f32 %v451, %v468
        %v475 = vadd.f32 %v452, %v468
        %v476 = vadd.f32 %v453, %v468
        %v477 = vadd.f32 %v454, %v468
        %v478 = vadd.f32 %v455, %v468
        %v479 = vadd.f32 %v456, %v468
        %v480 = vadd.f32 %v457, %v468
        %v481 = vadd.f32 %v458, %v468
        %v482 = vadd.f32 %v459, %v468
        %v483 = vadd.f32 %v460, %v468
        %v484 = vadd.f32 %v461, %v468
        %v485 = vadd.f32 %v462, %v468
        %v486 = vpack.c.bf16 %v471, %v470
        %v487 = vpack.c.bf16 %v473, %v472
        %v488 = vpack.c.bf16 %v475, %v474
        %v489 = vpack.c.bf16 %v477, %v476
        %v490 = vpack.c.bf16 %v479, %v478
        %v491 = vpack.c.bf16 %v481, %v480
        %v492 = vpack.c.bf16 %v483, %v482
        %v493 = vpack.c.bf16 %v485, %v484
        %v502 = vunpack.c.l.b16 %v486
        %v503 = vunpack.c.h.b16 %v486
        %v504 = vunpack.c.l.b16 %v487
        %v505 = vunpack.c.h.b16 %v487
        %v506 = vunpack.c.l.b16 %v488
        %v507 = vunpack.c.h.b16 %v488
        %v508 = vunpack.c.l.b16 %v489
        %v509 = vunpack.c.h.b16 %v489
        %v510 = vunpack.c.l.b16 %v490
        %v511 = vunpack.c.h.b16 %v490
        %v512 = vunpack.c.l.b16 %v491
        %v513 = vunpack.c.h.b16 %v491
        %v514 = vunpack.c.l.b16 %v492
        %v515 = vunpack.c.h.b16 %v492
        %v516 = vunpack.c.l.b16 %v493
        %v517 = vunpack.c.h.b16 %v493
        %v518 = vpack.c.b16 %v502, %v502
        %v519 = vpack.c.b16 %v503, %v503
        %v520 = vpack.c.b16 %v504, %v504
        %v521 = vpack.c.b16 %v505, %v505
        %v522 = vpack.c.b16 %v506, %v506
        %v523 = vpack.c.b16 %v507, %v507
        %v524 = vpack.c.b16 %v508, %v508
        %v525 = vpack.c.b16 %v509, %v509
        %v526 = vpack.c.b16 %v510, %v510
        %v527 = vpack.c.b16 %v511, %v511
        %v528 = vpack.c.b16 %v512, %v512
        %v529 = vpack.c.b16 %v513, %v513
        %v530 = vpack.c.b16 %v514, %v514
        %v531 = vpack.c.b16 %v515, %v515
        %v532 = vpack.c.b16 %v516, %v516
        %v533 = vpack.c.b16 %v517, %v517
        %vm550 = vcmask 257024
        %551 = vst.msk [vmem:[%s213] sm:$0xf] %vm550, %v518
        %552 = vst.msk [vmem:[%s213 + $0x4] sm:$0xf] %vm550, %v519
        %553 = vst.msk [vmem:[%s213 + $0x8] sm:$0xf] %vm550, %v520
        %554 = vst.msk [vmem:[%s213 + $0xc] sm:$0xf] %vm550, %v521
        %555 = vst.msk [vmem:[%s213 + $0x10] sm:$0xf] %vm550, %v522
        %556 = vst.msk [vmem:[%s213 + $0x14] sm:$0xf] %vm550, %v523
        %557 = vst.msk [vmem:[%s213 + $0x18] sm:$0xf] %vm550, %v524
        %558 = vst.msk [vmem:[%s213 + $0x1c] sm:$0xf] %vm550, %v525
        %559 = vst.msk [vmem:[%s213 + $0x20] sm:$0xf] %vm550, %v526
        %560 = vst.msk [vmem:[%s213 + $0x24] sm:$0xf] %vm550, %v527
        %561 = vst.msk [vmem:[%s213 + $0x28] sm:$0xf] %vm550, %v528
        %562 = vst.msk [vmem:[%s213 + $0x2c] sm:$0xf] %vm550, %v529
        %563 = vst.msk [vmem:[%s213 + $0x30] sm:$0xf] %vm550, %v530
        %564 = vst.msk [vmem:[%s213 + $0x34] sm:$0xf] %vm550, %v531
        %565 = vst.msk [vmem:[%s213 + $0x38] sm:$0xf] %vm550, %v532
        %566 = vst.msk [vmem:[%s213 + $0x3c] sm:$0xf] %vm550, %v533
        %s567 = sand.u32 %s97, 1
        %s568 = scalar_lea.sflag [#allocation4], %s567
        %s569 = sand.u32 %s97, 1
        %s570 = smul.addr %s569, 64
        %s571 = scalar_lea.vmem [#allocation8], %s570
        // Predicated region
        $region45: #{tpu_custom_call.1} parent=31 // pred_check
          %p572 = pneg %p107
        $region46: #{tpu_custom_call.1} parent=31 // pred_check_branch
          %574 = sbr.rel (%p572) target = $region48
        $region47: #{tpu_custom_call.1} parent=31 // pred_region
          %s576 = ssub.s32 1024, 1024
          %577 = vsyncadd %s568, %s576
          %s578 = smul.addr %s21, 16
          %s579 = smul.addr %s578, 64
          %s580 = scalar_lea.hbm %s3, %s579
          %s581 = sshll.u32 %s571, 4
          %s582 = int_to_ptr.vmem [resolvable:$true] %s581
          %587 = dma.vmem_to_hbm [thread:$0]  %s582, 1024, %s580, %s568, 64, 64, 4
        $region48: #{tpu_custom_call.1} parent=31 // pred_fallthru
          _
      $region32: #{tpu_custom_call.1} parent=5 // pred_fallthru
        _
      %p588 = scmp.le.s32.totalorder 2, %s16
      // Predicated region
      $region49: #{tpu_custom_call.1} parent=5 // pred_check
        %p589 = pneg %p588
      $region50: #{tpu_custom_call.1} parent=5 // pred_check_branch
        %591 = sbr.rel (%p589) target = $region52
      $region51: #{tpu_custom_call.1} parent=5 // pred_region
        %s592 = ssub.s32 %s16, 2
        // Predicated region
        $region53: #{tpu_custom_call.1} parent=51 // pred_check
          %p593 = pneg %p113
        $region54: #{tpu_custom_call.1} parent=51 // pred_check_branch
          %595 = sbr.rel (%p593) target = $region56
        $region55: #{tpu_custom_call.1} parent=51 // pred_region
          %s596 = sand.u32 %s98, 1
          %s597 = scalar_lea.sflag [#allocation4], %s596
          %s598 = sand.u32 %s98, 1
          %s599 = smul.addr %s598, 64
          %s600 = scalar_lea.vmem [#allocation8], %s599
          %601 = dma.done %s597, 1024
        $region56: #{tpu_custom_call.1} parent=51 // pred_fallthru
          _
      $region52: #{tpu_custom_call.1} parent=5 // pred_fallthru
        _
    $region6: #{tpu_custom_call.1} parent=1 // loop_footer
      %s20 = sadd.s32 1, %s16
    $region7: #{tpu_custom_call.1} parent=1 // loop_footer_branch
      %15 = sbr.rel target = $region3
    $region8: #{tpu_custom_call.1} parent=1 // loop_exit
      _
    %602 = vsyncpa [#allocation3], 1
    %s603 = scalar_lea.sflag [#allocation3], 1
    %604 = vsyncpa %s603, 1
    %605 = vsyncpa [#allocation6], 1
    %606 = vsyncpa [#allocation4], 1
    %s607 = scalar_lea.sflag [#allocation4], 1
    %608 = vsyncpa %s607, 1

</llo_original>
